<compile_context>
chip_gen: v5e
topology: v5e:2x2
jax: 0.10.0
libtpu: 0.0.40
codegen_flags: <defaults>
</compile_context>

<pallas_src>
import math

import numpy as np
import jax
import jax.numpy as jnp
from jax.experimental import pallas as pl
from jax.experimental.pallas import tpu as pltpu


def _round_up(x, m):
    return ((x + m - 1) // m) * m


# ---------------------------------------------------------------------------
# Kernel: one (TB, TN) output tile, accumulated over the K grid axis.
# ---------------------------------------------------------------------------
def _qnet_kernel(x_ref, wt_ref, o_ref, acc_ref):
    # grid = (batch tiles, N tiles, K tiles); K is innermost & "arbitrary".
    @pl.when(pl.program_id(2) == 0)
    def _init():
        acc_ref[...] = jnp.zeros_like(acc_ref)

    # Canonical (M, K) x (K, N) MXU matmul with fp32 accumulation.
    acc_ref[...] += jnp.dot(
        x_ref[...], wt_ref[...], preferred_element_type=jnp.float32
    )

    @pl.when(pl.program_id(2) == pl.num_programs(2) - 1)
    def _writeback():
        o_ref[...] = acc_ref[...].astype(o_ref.dtype)


# ---------------------------------------------------------------------------
# Tile selection
# ---------------------------------------------------------------------------
def _pick_batch_tile(B, cap):
    """Largest multiple-of-8 tile <= cap that divides B (avoids padding x).

    Falls back to padding B only when no such tile exists.
    """
    if B <= 8:
        return max(B, 1), max(B, 1)  # full-array-dim exemption covers B < 8
    t = (min(cap, B) // 8) * 8
    while t >= 8:
        if B % t == 0:
            return t, B
        t -= 8
    TB = min(cap, _round_up(B, 8))
    return TB, _round_up(B, TB)


def _pick_n_tile(N):
    """Tiny N: write exactly N lanes (no 64x padded writeback).  Large N: 128/256 tiles."""
    if N <= 128:
        return N, N
    N_pad = _round_up(N, 128)
    TN = 256 if N_pad % 256 == 0 else 128
    return TN, N_pad


def _pick_k_tile(K):
    """Keep whole K per step when it comfortably fits; otherwise tile the reduction."""
    if K <= 1024 or K % 128 != 0:
        return K, K  # full-array-dim exemption for small / odd K
    for tk in (512, 256, 128):
        if K % tk == 0:
            return tk, K
    return K, K


# ---------------------------------------------------------------------------
# Parameter helpers (one-time layout / dtype prep)
# ---------------------------------------------------------------------------
def init_qnet_params(key, input_dim, output_dim):
    """PyTorch nn.Linear(bias=False) default init: U(-1/sqrt(in), 1/sqrt(in))."""
    bound = 1.0 / math.sqrt(input_dim)
    return jax.random.uniform(
        key, (output_dim, input_dim), dtype=jnp.float32, minval=-bound, maxval=bound
    )


def prepare_qnet_weight(w, compute_dtype=jnp.bfloat16):
    """One-time prep: PyTorch (N, K) weight -> MXU-native (K, N), compute dtype."""
    return jnp.asarray(w).T.astype(compute_dtype)


# ---------------------------------------------------------------------------
# Forward
# ---------------------------------------------------------------------------
def qnet_forward(
    x,
    wt,
    *,
    block_b=None,
    out_dtype=jnp.float32,
    force_kernel=False,
    vmem_limit_bytes=48 * 1024 * 1024,
):
    """y = x @ wt  (bias-free Linear; wt is the pre-transposed (K, N) weight)."""
    B, K = x.shape
    K2, N = wt.shape
    assert K == K2, "input_dim mismatch between x and wt"
    compute_dtype = wt.dtype

    # Fast path: tiny problems (true CartPole size) are cheaper as a fused XLA
    # dot than a kernel launch + layout plumbing.
    if not force_kernel and B * K * N <= (1 << 15):
        return jnp.dot(
            x.astype(compute_dtype), wt, preferred_element_type=jnp.float32
        ).astype(out_dtype)

    x = x.astype(compute_dtype)  # no-op if already in compute dtype

    # Larger batch tiles when the N tile is small (keeps DMA pipeline saturated,
    # esp. on v7x); everything stays far under the 48 MiB VMEM budget.
    if block_b is None:
        block_b = 1024 if N <= 512 else 512

    TB, B_pad = _pick_batch_tile(B, block_b)
    TN, N_pad = _pick_n_tile(N)
    TK, K_pad = _pick_k_tile(K)

    if B_pad != B:
        x = jnp.pad(x, ((0, B_pad - B), (0, 0)))
    if N_pad != N:
        # Zero output columns; sliced off below.  Only hit when N > 128 and
        # not a multiple of 128.
        wt = jnp.pad(wt, ((0, 0), (0, N_pad - N)))

    grid = (B_pad // TB, N_pad // TN, K_pad // TK)

    itemsize_in = jnp.dtype(compute_dtype).itemsize
    itemsize_out = jnp.dtype(out_dtype).itemsize

    out = pl.pallas_call(
        _qnet_kernel,
        out_shape=jax.ShapeDtypeStruct((B_pad, N_pad), out_dtype),
        grid_spec=pltpu.PrefetchScalarGridSpec(
            num_scalar_prefetch=0,
            grid=grid,
            in_specs=[
                # x tile streamed over (batch, K).
                pl.BlockSpec((TB, TK), lambda bi, ni, ki: (bi, ki)),
                # Pre-transposed weight tile streamed over (K, N).
                pl.BlockSpec((TK, TN), lambda bi, ni, ki: (ki, ni)),
            ],
            # Output tile is constant across the K axis (accumulator pattern).
            out_specs=pl.BlockSpec((TB, TN), lambda bi, ni, ki: (bi, ni)),
            scratch_shapes=[pltpu.VMEM((TB, TN), jnp.float32)],
        ),
        compiler_params=pltpu.CompilerParams(
            dimension_semantics=("parallel", "parallel", "arbitrary"),
            vmem_limit_bytes=vmem_limit_bytes,
        ),
        cost_estimate=pl.CostEstimate(
            flops=2 * B_pad * K_pad * N_pad,
            transcendentals=0,
            bytes_accessed=(
                itemsize_in * B_pad * K_pad
                + itemsize_in * K_pad * N_pad
                + itemsize_out * B_pad * N_pad
            ),
        ),
    )(x, wt)

    if B_pad != B or N_pad != N:
        out = out[:B, :N]
    return out


def qnet_apply(x, w, *, compute_dtype=jnp.bfloat16, **kwargs):
    """Convenience wrapper taking the PyTorch-layout weight (N, K)."""
    return qnet_forward(x, prepare_qnet_weight(w, compute_dtype), **kwargs)


# ---------------------------------------------------------------------------
# Self-test
# ---------------------------------------------------------------------------
if __name__ == "__main__":
    key = jax.random.PRNGKey(0)
    k_w, k_x, k_w2, k_x2 = jax.random.split(key, 4)
    HI = jax.lax.Precision.HIGHEST

    # ---- CartPole-sized QNet: input_dim=4 (state), output_dim=2 (actions) ----
    input_dim, output_dim, batch = 4, 2, 8
    w = init_qnet_params(k_w, input_dim, output_dim)
    x = jax.random.normal(k_x, (batch, input_dim), dtype=jnp.float32)
    y_ref = jnp.dot(x, w.T, precision=HI)

    # Forced through the Pallas kernel in f32 (tiny dims use the
    # full-array-dim exemption from the (8,128) tiling rule).
    wt32 = prepare_qnet_weight(w, compute_dtype=jnp.float32)
    y = jax.block_until_ready(qnet_forward(x, wt32, force_kernel=True))
    assert y.shape == (batch, output_dim)
    assert jnp.allclose(y, y_ref, atol=1e-3, rtol=1e-3)

    # Default dispatch at this size takes the fused-dot fast path.
    y_fast = jax.block_until_ready(qnet_forward(x, wt32))
    assert jnp.allclose(y_fast, y_ref, atol=5e-3, rtol=5e-3)

    # ---- Larger shape exercising the tiled (batch, N, K) accumulator path ----
    B2, K2d, N2 = 512, 1536, 384  # grid (1, 3, 3): N tiling + K accumulation
    w2 = init_qnet_params(k_w2, K2d, N2)
    x2 = jax.random.normal(k_x2, (B2, K2d), dtype=jnp.float32)
    y2_ref = jnp.dot(x2, w2.T, precision=HI)

    # f32 compute: tight check of tiling / accumulation correctness.
    wt2_f32 = prepare_qnet_weight(w2, compute_dtype=jnp.float32)
    y2 = jax.block_until_ready(qnet_forward(x2, wt2_f32))
    assert y2.shape == (B2, N2)
    assert jnp.allclose(y2, y2_ref, atol=1e-3, rtol=1e-3)

    # bf16 compute (the default, HBM-traffic-optimized path): compare against a
    # reference with the same input quantization.
    wt2_bf16 = prepare_qnet_weight(w2)  # bfloat16
    y2b = jax.block_until_ready(qnet_forward(x2, wt2_bf16))
    xq = x2.astype(jnp.bfloat16).astype(jnp.float32)
    wq = w2.astype(jnp.bfloat16).astype(jnp.float32)
    y2b_ref = jnp.dot(xq, wq.T, precision=HI)
    assert jnp.allclose(y2b, y2b_ref, atol=1e-2, rtol=1e-2)

    print("KERNEL_OK")
</pallas_src>

<mosaic_0001>
module attributes {stable_mosaic.version = 11 : i64} {
  func.func @_qnet_kernel(%arg0: i32, %arg1: i32, %arg2: i32, %arg3: memref<8x4xf32, #tpu.memory_space<vmem>>, %arg4: memref<4x2xf32, #tpu.memory_space<vmem>>, %arg5: memref<8x2xf32, #tpu.memory_space<vmem>>, %arg6: memref<8x2xf32, #tpu.memory_space<vmem>>) attributes {dimension_semantics = [#tpu.dimension_semantics<parallel>, #tpu.dimension_semantics<parallel>, #tpu.dimension_semantics<arbitrary>], iteration_bounds = array<i64: 1, 1, 1>, scalar_prefetch = 0 : i64, scratch_operands = 1 : i64, tpu.core_type = #tpu.core_type<tc>, window_params = [{transform_indices = @transform_0, window_bounds = array<i64: 8, 4>}, {transform_indices = @transform_1, window_bounds = array<i64: 4, 2>}, {transform_indices = @transform_2, window_bounds = array<i64: 8, 2>}]} {
    %c0_i32 = arith.constant 0 : i32
    %0 = arith.cmpi eq, %arg2, %c0_i32 : i32
    %1 = arith.extui %0 : i1 to i32
    %c0_i32_0 = arith.constant 0 : i32
    %2 = arith.cmpi ne, %1, %c0_i32_0 : i32
    scf.if %2 {
      %cst_10 = arith.constant 0.000000e+00 : f32
      %12 = vector.broadcast %cst_10 : f32 to vector<8x2xf32>
      %c0_11 = arith.constant 0 : index
      %c0_12 = arith.constant 0 : index
      %13 = vector.load %arg6[%c0_11, %c0_12] : memref<8x2xf32, #tpu.memory_space<vmem>>, vector<8x2xf32>
      tpu.vector_store %arg6[%c0_11, %c0_12], %12 {strides = array<i32>} : memref<8x2xf32, #tpu.memory_space<vmem>>, vector<8x2xf32>,
    } else {
    }
    %c0 = arith.constant 0 : index
    %c0_1 = arith.constant 0 : index
    %3 = vector.load %arg6[%c0, %c0_1] : memref<8x2xf32, #tpu.memory_space<vmem>>, vector<8x2xf32>
    %c0_2 = arith.constant 0 : index
    %c0_3 = arith.constant 0 : index
    %4 = vector.load %arg3[%c0_2, %c0_3] : memref<8x4xf32, #tpu.memory_space<vmem>>, vector<8x4xf32>
    %c0_4 = arith.constant 0 : index
    %c0_5 = arith.constant 0 : index
    %5 = vector.load %arg4[%c0_4, %c0_5] : memref<4x2xf32, #tpu.memory_space<vmem>>, vector<4x2xf32>
    %cst = arith.constant dense<0.000000e+00> : vector<8x2xf32>
    %6 = tpu.matmul %4, %5, %cst {dimension_numbers = #tpu.dot_dimension_numbers<[1], [0], [0], [1], [0, 0, 1, 1], [], []>} : vector<8x4xf32>, vector<4x2xf32>, vector<8x2xf32> -> vector<8x2xf32>
    %7 = arith.addf %3, %6 : vector<8x2xf32>
    %c0_6 = arith.constant 0 : index
    %c0_7 = arith.constant 0 : index
    %8 = vector.load %arg6[%c0_6, %c0_7] : memref<8x2xf32, #tpu.memory_space<vmem>>, vector<8x2xf32>
    tpu.vector_store %arg6[%c0_6, %c0_7], %7 {strides = array<i32>} : memref<8x2xf32, #tpu.memory_space<vmem>>, vector<8x2xf32>,
    %c0_i32_8 = arith.constant 0 : i32
    %9 = arith.cmpi eq, %arg2, %c0_i32_8 : i32
    %10 = arith.extui %9 : i1 to i32
    %c0_i32_9 = arith.constant 0 : i32
    %11 = arith.cmpi ne, %10, %c0_i32_9 : i32
    scf.if %11 {
      %c0_10 = arith.constant 0 : index
      %c0_11 = arith.constant 0 : index
      %12 = vector.load %arg6[%c0_10, %c0_11] : memref<8x2xf32, #tpu.memory_space<vmem>>, vector<8x2xf32>
      %c0_12 = arith.constant 0 : index
      %c0_13 = arith.constant 0 : index
      %13 = vector.load %arg5[%c0_12, %c0_13] : memref<8x2xf32, #tpu.memory_space<vmem>>, vector<8x2xf32>
      tpu.vector_store %arg5[%c0_12, %c0_13], %12 {strides = array<i32>} : memref<8x2xf32, #tpu.memory_space<vmem>>, vector<8x2xf32>,
    } else {
    }
    return
  }
  func.func @transform_0(%arg0: i32, %arg1: i32, %arg2: i32) -> (i32, i32) {
    %c0_i32 = arith.constant 0 : i32
    return %arg0, %arg2 : i32, i32
  }
  func.func @transform_1(%arg0: i32, %arg1: i32, %arg2: i32) -> (i32, i32) {
    %c0_i32 = arith.constant 0 : i32
    return %arg2, %arg1 : i32, i32
  }
  func.func @transform_2(%arg0: i32, %arg1: i32, %arg2: i32) -> (i32, i32) {
    %c0_i32 = arith.constant 0 : i32
    return %arg0, %arg1 : i32, i32
  }
}

</mosaic_0001>

<llo_original>
// kernel: tpu_custom_call.1
$region0: #{tpu_custom_call.1}
  #allocation0 [shape = 'u32[]', space=smem, size = 0x4, offset = 0x4, fixed_abs, tag = 'smem constant byte address 0x4 - core index']
  #allocation1 [shape = 'u32[72,128]{1,0:T(1,128)}', space=vmem, size = 0x9000, scoped, tag = 'internal scratch']
  #allocation2 [shape = 'f32[8,2]{1,0:T(8,128)}', space=vmem, size = 0x1000, scoped, tag = 'scratch operand']
  %s0 = inlined_call_operand.vmem [shape: f32[8,4], index: 0, kind: input, shape index: {}]
  %s1 = inlined_call_operand.vmem [shape: f32[4,2], index: 1, kind: input, shape index: {}]
  %s2 = inlined_call_operand.vmem [shape: f32[8,2], index: 2, kind: output, shape index: {}]
  %s3 = sld [smem:[#allocation0]]
  $region26: #{tpu_custom_call.1} parent=0
    _
  %s5 = ssub.s32 1, %s3
  %s6 = scalar_select 0, %s5, %s3
  // Predicated region
  $region2: #{tpu_custom_call.1} parent=0 // pred_check
    _
  $region3: #{tpu_custom_call.1} parent=0 // pred_check_branch
    %8 = sbr.rel (0) target = $region5
  $region4: #{tpu_custom_call.1} parent=0 // pred_region
    _
  $region5: #{tpu_custom_call.1} parent=0 // pred_fallthru
    _
  // Predicated region
  $region6: #{tpu_custom_call.1} parent=0 // pred_check
    _
  $region7: #{tpu_custom_call.1} parent=0 // pred_check_branch
    %10 = sbr.rel (0) target = $region9
  $region8: #{tpu_custom_call.1} parent=0 // pred_region
    _
  $region9: #{tpu_custom_call.1} parent=0 // pred_fallthru
    _
  %p11 = scmp.eq.s32.totalorder 0, 0
  // Predicated region
  $region10: #{tpu_custom_call.1} parent=0 // pred_check
    %p12 = pneg %p11
  $region11: #{tpu_custom_call.1} parent=0 // pred_check_branch
    %14 = sbr.rel (%p12) target = $region13
  $region12: #{tpu_custom_call.1} parent=0 // pred_region
    %vm15 = vcmask 15360
    %16 = vst.msk [vmem:[#allocation2] sm:$0xff] %vm15, 0.0
  $region13: #{tpu_custom_call.1} parent=0 // pred_fallthru
    _
  %v17 = vld [vmem:[#allocation2] sm:$0xff]
  %v18 = vld [vmem:[%s0] sm:$0xff]
  %v19 = vld [vmem:[%s1] sm:$0xf]
  %vm20 = vcmask 31744
  %v22 = vsel %vm20, %v18, 0
  %vm24 = vcmask 1043456
  %v26 = vsel %vm24, %v19, 0
  %28 = vmatpush.msra.mxu0 0.0
  %29 = vmatpush.msra.mxu0 0.0
  %30 = vmatpush.msra.mxu0 0.0
  %31 = vmatpush.msra.mxu0 0.0
  %32 = vmatpush.msra.mxu0 0.0
  %33 = vmatpush.msra.mxu0 0.0
  %34 = vmatpush.msra.mxu0 0.0
  %35 = vmatpush.msra.mxu0 0.0
  %36 = vmatpush.msra.mxu0 0.0
  %37 = vmatpush.msra.mxu0 0.0
  %38 = vmatpush.msra.mxu0 0.0
  %39 = vmatpush.msra.mxu0 0.0
  %40 = vmatpush.msra.mxu0 0.0
  %41 = vmatpush.msra.mxu0 0.0
  %42 = vmatpush.msra.mxu0 0.0
  %43 = vmatpush.msra.mxu0 %v26
  %44 = vmatmul.f32.gmra.mxu0 %v22
  %v45 = vpop.f32.mrf.mxu0
  %v46 = vadd.f32 0.0, %v45
  %47 = vdwg.mxu0
  %v48 = vadd.f32 %v17, %v46
  %vm49 = vcmask 15360
  %50 = vst.msk [vmem:[#allocation2] sm:$0xff] %vm49, %v48
  // Predicated region
  $region14: #{tpu_custom_call.1} parent=0 // pred_check
    %p51 = pneg %p11
  $region15: #{tpu_custom_call.1} parent=0 // pred_check_branch
    %53 = sbr.rel (%p51) target = $region17
  $region16: #{tpu_custom_call.1} parent=0 // pred_region
    %v54 = vld [vmem:[#allocation2] sm:$0xff]
    %55 = vst.msk [vmem:[%s2] sm:$0xff] %vm49, %v54
  $region17: #{tpu_custom_call.1} parent=0 // pred_fallthru
    _
  // Predicated region
  $region18: #{tpu_custom_call.1} parent=0 // pred_check
    _
  $region19: #{tpu_custom_call.1} parent=0 // pred_check_branch
    %57 = sbr.rel (0) target = $region21
  $region20: #{tpu_custom_call.1} parent=0 // pred_region
    _
  $region21: #{tpu_custom_call.1} parent=0 // pred_fallthru
    _
  // Predicated region
  $region22: #{tpu_custom_call.1} parent=0 // pred_check
    _
  $region23: #{tpu_custom_call.1} parent=0 // pred_check_branch
    %59 = sbr.rel (0) target = $region25
  $region24: #{tpu_custom_call.1} parent=0 // pred_region
    _
  $region25: #{tpu_custom_call.1} parent=0 // pred_fallthru
    _

</llo_original>
